<compile_context>
chip_gen: v5e
topology: v5e:2x2
jax: 0.10.0
libtpu: 0.0.40
codegen_flags: <defaults>
</compile_context>

<pallas_src>
import jax
import jax.numpy as jnp
from jax.experimental import pallas as pl
from jax.experimental.pallas import tpu as pltpu


# ----------------------------------------------------------------------------
# Kernels
# ----------------------------------------------------------------------------
def _channel_attention_kernel(x_ref, w1t_ref, b1_ref, w2t_ref, b2_ref, o_ref):
    Bt = x_ref.shape[0]
    x = x_ref[...]                                            # (Bt, C, HW) native dtype

    # AdaptiveAvgPool2d(1) / AdaptiveMaxPool2d(1): reduce over the lane axis.
    avg = jnp.mean(x, axis=2, dtype=jnp.float32)              # (Bt, C) f32 accumulation
    mx = jnp.max(x, axis=2).astype(jnp.float32)               # (Bt, C)

    # Both MLP branches through the MXU in one matmul: rows [0,Bt)=avg, rest=max.
    pooled = jnp.concatenate([avg, mx], axis=0)               # (2*Bt, C)
    h = jnp.maximum(
        jnp.dot(pooled, w1t_ref[...], preferred_element_type=jnp.float32)
        + b1_ref[...], 0.0)                                   # (2*Bt, Hid)
    y = (jnp.dot(h, w2t_ref[...], preferred_element_type=jnp.float32)
         + b2_ref[...])                                       # (2*Bt, C)

    # mlp(avg) + mlp(max)  (b2 appears twice, matching the PyTorch reference).
    gate = jax.nn.sigmoid(y[:Bt] + y[Bt:])                    # (Bt, C) f32

    # f32 gate multiply; cast only the product to the output dtype.
    o_ref[...] = (x.astype(jnp.float32) * gate[:, :, None]).astype(o_ref.dtype)


def _pool_kernel(x_ref, avg_ref, max_ref):
    # Two-pass fallback, pass 1: per-(batch, channel-tile) avg/max pooling.
    x = x_ref[...]                                            # (1, tc, HW)
    avg_ref[...] = jnp.mean(x, axis=2, dtype=jnp.float32)[:, None, :]   # (1,1,tc)
    max_ref[...] = jnp.max(x, axis=2).astype(jnp.float32)[:, None, :]   # (1,1,tc)


def _apply_kernel(avg_ref, max_ref, w1t_ref, b1_ref, w2t_ref, b2_ref,
                  x_ref, o_ref):
    # Two-pass fallback, pass 2: recompute the tiny MLP for this channel tile
    # and apply the sigmoid gate to the x block.
    pooled = jnp.concatenate([avg_ref[0], max_ref[0]], axis=0)     # (2, C)
    h = jnp.maximum(
        jnp.dot(pooled, w1t_ref[...], preferred_element_type=jnp.float32)
        + b1_ref[...], 0.0)                                        # (2, Hid)
    y = (jnp.dot(h, w2t_ref[...], preferred_element_type=jnp.float32)
         + b2_ref[...])                                            # (2, tc)
    gate = jax.nn.sigmoid(y[0:1] + y[1:2])                         # (1, tc)
    o_ref[...] = (x_ref[...].astype(jnp.float32)
                  * gate[:, :, None]).astype(o_ref.dtype)


# ----------------------------------------------------------------------------
# Sizing helpers
# ----------------------------------------------------------------------------
def _tpu_vmem_budget_and_cores():
    """(usable VMEM budget in bytes, TensorCores per chip) — generation aware."""
    cap = 64 << 20                     # conservative default
    cores = 1
    try:
        info = pltpu.get_tpu_info()
        cap = int(getattr(info, "vmem_capacity_bytes", cap) or cap)
    except Exception:
        pass
    try:
        kind = jax.devices()[0].device_kind.lower()
    except Exception:
        kind = ""
    # Parts with 2 TensorCores per chip (megacore): v4, v5p, v7x.
    if ("v7" in kind) or ("v4" in kind) or ("v5p" in kind):
        cores = 2
    if "v7" in kind:
        cap = min(cap, 64 << 20)       # v7x VMEM is per-TC
    headroom = (12 << 20) if cap > (96 << 20) else (8 << 20)
    budget = max(cap - headroom, 16 << 20)
    return budget, cores


def _pick_channel_tile(C, HW, itemsize, budget):
    """Largest lane-legal channel tile (multiple of 128 dividing C, or C)."""
    per_channel = HW * itemsize
    cands = [C] + [t for t in range(128, C, 128) if C % t == 0]
    usable = max(budget - (8 << 20), 1 << 20)
    fits = [t for t in cands if 4 * t * per_channel <= usable]
    if fits:
        return max(fits)
    return min(cands)                  # best effort


# ----------------------------------------------------------------------------
# Wrappers
# ----------------------------------------------------------------------------
def _channel_attention_two_pass(x2, w1t, b1r, w2t, b2r, B, C, HW, Hid,
                                out_dtype, itemsize, budget):
    tc = _pick_channel_tile(C, HW, itemsize, budget)
    nc = C // tc
    vmem_limit = int(min(budget, max(4 * tc * HW * itemsize + (8 << 20),
                                     16 << 20)))
    params = pltpu.CompilerParams(
        dimension_semantics=("parallel", "parallel"),
        vmem_limit_bytes=vmem_limit)

    avg_full, max_full = pl.pallas_call(
        _pool_kernel,
        out_shape=(jax.ShapeDtypeStruct((B, 1, C), jnp.float32),
                   jax.ShapeDtypeStruct((B, 1, C), jnp.float32)),
        grid_spec=pltpu.PrefetchScalarGridSpec(
            num_scalar_prefetch=0,
            grid=(B, nc),
            in_specs=[pl.BlockSpec((1, tc, HW), lambda b, c: (b, c, 0))],
            out_specs=[pl.BlockSpec((1, 1, tc), lambda b, c: (b, 0, c)),
                       pl.BlockSpec((1, 1, tc), lambda b, c: (b, 0, c))],
        ),
        compiler_params=params,
    )(x2)

    out2 = pl.pallas_call(
        _apply_kernel,
        out_shape=jax.ShapeDtypeStruct((B, C, HW), out_dtype),
        grid_spec=pltpu.PrefetchScalarGridSpec(
            num_scalar_prefetch=0,
            grid=(B, nc),
            in_specs=[
                pl.BlockSpec((1, 1, C), lambda b, c: (b, 0, 0)),
                pl.BlockSpec((1, 1, C), lambda b, c: (b, 0, 0)),
                pl.BlockSpec((C, Hid), lambda b, c: (0, 0)),
                pl.BlockSpec((1, Hid), lambda b, c: (0, 0)),
                pl.BlockSpec((Hid, tc), lambda b, c: (0, c)),
                pl.BlockSpec((1, tc), lambda b, c: (0, c)),
                pl.BlockSpec((1, tc, HW), lambda b, c: (b, c, 0)),
            ],
            out_specs=pl.BlockSpec((1, tc, HW), lambda b, c: (b, c, 0)),
        ),
        compiler_params=params,
    )(avg_full, max_full, w1t, b1r, w2t, b2r, x2)
    return out2


def channel_attention(x, w1, b1, w2, b2, *, block_bytes_target=None,
                      batch_tile=None, force_two_pass=False):
    """x: (B, C, H, W); w1: (Hid, C); b1: (Hid,); w2: (C, Hid); b2: (C,)."""
    B, C, H, W = x.shape
    HW = H * W
    Hid = w1.shape[0]

    # Lane-dense layout: flatten spatial dims in the wrapper (metadata-only).
    x2 = x.reshape(B, C, HW)
    w1t = jnp.transpose(w1)                                   # (C, Hid)
    w2t = jnp.transpose(w2)                                   # (Hid, C)
    b1r = b1.reshape(1, Hid)
    b2r = b2.reshape(1, C)

    budget, cores = _tpu_vmem_budget_and_cores()
    itemsize = jnp.dtype(x.dtype).itemsize
    bytes_per_item = C * HW * itemsize
    # Weights stay default-double-buffered; account for 2x in the budget.
    weight_bytes = 2 * sum(int(a.size) * jnp.dtype(a.dtype).itemsize
                           for a in (w1t, b1r, w2t, b2r))

    # Largest input block such that 2x in + 2x out + weights + margin fits.
    max_block_bytes = max((budget - weight_bytes - (2 << 20)) // 4, 0)
    if block_bytes_target is None:
        # Mem-bound kernel: go for large blocks (more on 128 MiB-VMEM parts).
        block_bytes_target = (16 << 20) if budget >= (96 << 20) else (10 << 20)
    block_bytes_target = min(block_bytes_target, max_block_bytes)

    if force_two_pass or bytes_per_item > max_block_bytes:
        # One batch item does not fit: channel-tiled two-pass fallback.
        out2 = _channel_attention_two_pass(
            x2, w1t, b1r, w2t, b2r, B, C, HW, Hid, x.dtype, itemsize, budget)
        return out2.reshape(B, C, H, W)

    if batch_tile is not None:
        bt = int(batch_tile)
    else:
        bt = max(1, block_bytes_target // bytes_per_item)
        bt = min(bt, B)
        if cores >= 2 and B >= 2:
            bt = min(bt, max(1, B // 2))          # give both TensorCores work
        # Keep >=2 steps per core for DMA/compute overlap, but on single-TC
        # parts only if blocks stay multi-MiB (no pointless step overhead).
        desired_steps = 2 * cores
        if B >= desired_steps:
            bt_pipe = max(1, B // desired_steps)
            if cores >= 2 or bt_pipe * bytes_per_item >= (2 << 20):
                bt = min(bt, bt_pipe)
    bt = max(1, min(bt, B))

    nsteps = pl.cdiv(B, bt)            # ragged last block if bt does not divide B
    block_bytes = bt * bytes_per_item
    vmem_limit = int(min(budget, max(4 * block_bytes + weight_bytes + (4 << 20),
                                     16 << 20)))

    out2 = pl.pallas_call(
        _channel_attention_kernel,
        out_shape=jax.ShapeDtypeStruct((B, C, HW), x.dtype),
        grid_spec=pltpu.PrefetchScalarGridSpec(
            num_scalar_prefetch=0,
            grid=(nsteps,),
            in_specs=[
                pl.BlockSpec((bt, C, HW), lambda b: (b, 0, 0)),
                pl.BlockSpec((C, Hid), lambda b: (0, 0)),
                pl.BlockSpec((1, Hid), lambda b: (0, 0)),
                pl.BlockSpec((Hid, C), lambda b: (0, 0)),
                pl.BlockSpec((1, C), lambda b: (0, 0)),
            ],
            out_specs=pl.BlockSpec((bt, C, HW), lambda b: (b, 0, 0)),
        ),
        compiler_params=pltpu.CompilerParams(
            dimension_semantics=("parallel",),
            vmem_limit_bytes=vmem_limit),
    )(x2, w1t, b1r, w2t, b2r)
    return out2.reshape(B, C, H, W)


def channel_attention_reference(x, w1, b1, w2, b2):
    """Pure-JAX reference mirroring the PyTorch forward exactly."""
    avg = jnp.mean(x, axis=(2, 3))                            # (B, C)
    mx = jnp.max(x, axis=(2, 3))                              # (B, C)

    def mlp(v):
        h = jnp.maximum(v @ w1.T + b1, 0.0)
        return h @ w2.T + b2

    out = mlp(avg) + mlp(mx)                                  # (B, C)
    gate = jax.nn.sigmoid(out)[:, :, None, None]              # (B, C, 1, 1)
    return x * gate


# ----------------------------------------------------------------------------
# Tests
# ----------------------------------------------------------------------------
if __name__ == "__main__":
    def make_inputs(key, B, C, H, W, reduction_ratio=16):
        Hid = max(1, C // reduction_ratio)
        kx, k1, k2, k3, k4 = jax.random.split(key, 5)
        x = jax.random.normal(kx, (B, C, H, W), dtype=jnp.float32)
        # nn.Linear(C, Hid) weight is (Hid, C); nn.Linear(Hid, C) is (C, Hid).
        w1 = jax.random.normal(k1, (Hid, C), dtype=jnp.float32) * 0.1
        b1 = jax.random.normal(k2, (Hid,), dtype=jnp.float32) * 0.1
        w2 = jax.random.normal(k3, (C, Hid), dtype=jnp.float32) * 0.1
        b2 = jax.random.normal(k4, (C,), dtype=jnp.float32) * 0.1
        return x, w1, b1, w2, b2

    # 1) Main path, lane-aligned HW.
    x, w1, b1, w2, b2 = make_inputs(jax.random.PRNGKey(0), 2, 32, 16, 16)
    out = jax.block_until_ready(channel_attention(x, w1, b1, w2, b2))
    ref = channel_attention_reference(x, w1, b1, w2, b2)
    assert out.shape == x.shape
    assert jnp.allclose(out, ref, atol=1e-5, rtol=1e-5), "mismatch (main path)"

    # 2) HW not a multiple of 128 (14x14): masked-lane reductions / stores.
    x, w1, b1, w2, b2 = make_inputs(jax.random.PRNGKey(1), 2, 32, 14, 14)
    out = jax.block_until_ready(channel_attention(x, w1, b1, w2, b2))
    ref = channel_attention_reference(x, w1, b1, w2, b2)
    assert jnp.allclose(out, ref, atol=1e-5, rtol=1e-5), "mismatch (HW=196)"

    # 3) Ragged batch grid (B not a multiple of the batch tile).
    x, w1, b1, w2, b2 = make_inputs(jax.random.PRNGKey(2), 3, 32, 16, 16)
    out = jax.block_until_ready(
        channel_attention(x, w1, b1, w2, b2, batch_tile=2))
    ref = channel_attention_reference(x, w1, b1, w2, b2)
    assert jnp.allclose(out, ref, atol=1e-5, rtol=1e-5), "mismatch (ragged B)"

    # 4) Channel-tiled two-pass fallback path (forced at a small shape).
    x, w1, b1, w2, b2 = make_inputs(jax.random.PRNGKey(3), 2, 32, 16, 16)
    out = jax.block_until_ready(
        channel_attention(x, w1, b1, w2, b2, force_two_pass=True))
    ref = channel_attention_reference(x, w1, b1, w2, b2)
    assert jnp.allclose(out, ref, atol=1e-5, rtol=1e-5), "mismatch (two-pass)"

    print("KERNEL_OK")
</pallas_src>

<mosaic_0001>
module attributes {stable_mosaic.version = 11 : i64} {
  func.func @_channel_attention_kernel(%arg0: i32, %arg1: memref<2x32x256xf32, #tpu.memory_space<vmem>>, %arg2: memref<32x2xf32, #tpu.memory_space<vmem>>, %arg3: memref<1x2xf32, #tpu.memory_space<vmem>>, %arg4: memref<2x32xf32, #tpu.memory_space<vmem>>, %arg5: memref<1x32xf32, #tpu.memory_space<vmem>>, %arg6: memref<2x32x256xf32, #tpu.memory_space<vmem>>) attributes {dimension_semantics = [#tpu.dimension_semantics<parallel>], iteration_bounds = array<i64: 1>, scalar_prefetch = 0 : i64, scratch_operands = 0 : i64, tpu.core_type = #tpu.core_type<tc>, window_params = [{transform_indices = @transform_0, window_bounds = array<i64: 2, 32, 256>}, {pipeline_mode = #tpu.pipeline_mode<synchronous>, transform_indices = @transform_1, window_bounds = array<i64: 32, 2>}, {pipeline_mode = #tpu.pipeline_mode<synchronous>, transform_indices = @transform_2, window_bounds = array<i64: 1, 2>}, {pipeline_mode = #tpu.pipeline_mode<synchronous>, transform_indices = @transform_3, window_bounds = array<i64: 2, 32>}, {pipeline_mode = #tpu.pipeline_mode<synchronous>, transform_indices = @transform_4, window_bounds = array<i64: 1, 32>}, {transform_indices = @transform_5, window_bounds = array<i64: 2, 32, 256>}]} {
    %c0 = arith.constant 0 : index
    %c0_0 = arith.constant 0 : index
    %c0_1 = arith.constant 0 : index
    %0 = vector.load %arg1[%c0, %c0_0, %c0_1] : memref<2x32x256xf32, #tpu.memory_space<vmem>>, vector<2x32x256xf32>
    %cst = arith.constant dense<0.000000e+00> : vector<2x32xf32>
    %1 = vector.multi_reduction <add>, %0, %cst [2] : vector<2x32x256xf32> to vector<2x32xf32>
    %cst_2 = arith.constant 2.560000e+02 : f32
    %2 = vector.broadcast %cst_2 : f32 to vector<2x32xf32>
    %3 = arith.divf %1, %2 : vector<2x32xf32>
    %cst_3 = arith.constant dense<0xFF800000> : vector<2x32xf32>
    %4 = vector.multi_reduction <maximumf>, %0, %cst_3 [2] : vector<2x32x256xf32> to vector<2x32xf32>
    %5 = tpu.concatenate %3, %4 in 0 : vector<2x32xf32>, vector<2x32xf32> -> vector<4x32xf32>
    %c0_4 = arith.constant 0 : index
    %c0_5 = arith.constant 0 : index
    %6 = vector.load %arg2[%c0_4, %c0_5] : memref<32x2xf32, #tpu.memory_space<vmem>>, vector<32x2xf32>
    %cst_6 = arith.constant dense<0.000000e+00> : vector<4x2xf32>
    %7 = tpu.matmul %5, %6, %cst_6 {dimension_numbers = #tpu.dot_dimension_numbers<[1], [0], [0], [1], [0, 0, 1, 1], [], []>} : vector<4x32xf32>, vector<32x2xf32>, vector<4x2xf32> -> vector<4x2xf32>
    %c0_7 = arith.constant 0 : index
    %c0_8 = arith.constant 0 : index
    %8 = vector.load %arg3[%c0_7, %c0_8] : memref<1x2xf32, #tpu.memory_space<vmem>>, vector<1x2xf32>
    %9 = vector.broadcast %8 : vector<1x2xf32> to vector<4x2xf32>
    %10 = arith.addf %7, %9 : vector<4x2xf32>
    %cst_9 = arith.constant 0.000000e+00 : f32
    %11 = vector.broadcast %cst_9 : f32 to vector<4x2xf32>
    %12 = arith.maximumf %10, %11 : vector<4x2xf32>
    %c0_10 = arith.constant 0 : index
    %c0_11 = arith.constant 0 : index
    %13 = vector.load %arg4[%c0_10, %c0_11] : memref<2x32xf32, #tpu.memory_space<vmem>>, vector<2x32xf32>
    %cst_12 = arith.constant dense<0.000000e+00> : vector<4x32xf32>
    %14 = tpu.matmul %12, %13, %cst_12 {dimension_numbers = #tpu.dot_dimension_numbers<[1], [0], [0], [1], [0, 0, 1, 1], [], []>} : vector<4x2xf32>, vector<2x32xf32>, vector<4x32xf32> -> vector<4x32xf32>
    %c0_13 = arith.constant 0 : index
    %c0_14 = arith.constant 0 : index
    %15 = vector.load %arg5[%c0_13, %c0_14] : memref<1x32xf32, #tpu.memory_space<vmem>>, vector<1x32xf32>
    %16 = vector.broadcast %15 : vector<1x32xf32> to vector<4x32xf32>
    %17 = arith.addf %14, %16 : vector<4x32xf32>
    %18 = vector.extract_strided_slice %17 {offsets = [0, 0], sizes = [2, 32], strides = [1, 1]} : vector<4x32xf32> to vector<2x32xf32>
    %19 = vector.extract_strided_slice %17 {offsets = [2, 0], sizes = [2, 32], strides = [1, 1]} : vector<4x32xf32> to vector<2x32xf32>
    %20 = arith.addf %18, %19 : vector<2x32xf32>
    %21 = arith.negf %20 : vector<2x32xf32>
    %22 = math.exp %21 : vector<2x32xf32>
    %cst_15 = arith.constant 1.000000e+00 : f32
    %23 = vector.broadcast %cst_15 : f32 to vector<2x32xf32>
    %24 = arith.addf %23, %22 : vector<2x32xf32>
    %25 = arith.divf %23, %24 : vector<2x32xf32>
    %26 = vector.shape_cast %25 : vector<2x32xf32> to vector<2x32x1xf32>
    %27 = vector.broadcast %26 : vector<2x32x1xf32> to vector<2x32x256xf32>
    %28 = arith.mulf %0, %27 : vector<2x32x256xf32>
    %c0_16 = arith.constant 0 : index
    %c0_17 = arith.constant 0 : index
    %c0_18 = arith.constant 0 : index
    %29 = vector.load %arg6[%c0_16, %c0_17, %c0_18] : memref<2x32x256xf32, #tpu.memory_space<vmem>>, vector<2x32x256xf32>
    tpu.vector_store %arg6[%c0_16, %c0_17, %c0_18], %28 {strides = array<i32>} : memref<2x32x256xf32, #tpu.memory_space<vmem>>, vector<2x32x256xf32>,
    return
  }
  func.func @transform_0(%arg0: i32) -> (i32, i32, i32) {
    %c0_i32 = arith.constant 0 : i32
    %c0_i32_0 = arith.constant 0 : i32
    %c0_i32_1 = arith.constant 0 : i32
    return %arg0, %c0_i32, %c0_i32_0 : i32, i32, i32
  }
  func.func @transform_1(%arg0: i32) -> (i32, i32) {
    %c0_i32 = arith.constant 0 : i32
    %c0_i32_0 = arith.constant 0 : i32
    %c0_i32_1 = arith.constant 0 : i32
    return %c0_i32, %c0_i32_0 : i32, i32
  }
  func.func @transform_2(%arg0: i32) -> (i32, i32) {
    %c0_i32 = arith.constant 0 : i32
    %c0_i32_0 = arith.constant 0 : i32
    %c0_i32_1 = arith.constant 0 : i32
    return %c0_i32, %c0_i32_0 : i32, i32
  }
  func.func @transform_3(%arg0: i32) -> (i32, i32) {
    %c0_i32 = arith.constant 0 : i32
    %c0_i32_0 = arith.constant 0 : i32
    %c0_i32_1 = arith.constant 0 : i32
    return %c0_i32, %c0_i32_0 : i32, i32
  }
  func.func @transform_4(%arg0: i32) -> (i32, i32) {
    %c0_i32 = arith.constant 0 : i32
    %c0_i32_0 = arith.constant 0 : i32
    %c0_i32_1 = arith.constant 0 : i32
    return %c0_i32, %c0_i32_0 : i32, i32
  }
  func.func @transform_5(%arg0: i32) -> (i32, i32, i32) {
    %c0_i32 = arith.constant 0 : i32
    %c0_i32_0 = arith.constant 0 : i32
    %c0_i32_1 = arith.constant 0 : i32
    return %arg0, %c0_i32, %c0_i32_0 : i32, i32, i32
  }
}

</mosaic_0001>

<llo_original>
// kernel: tpu_custom_call.1
$region0: #{tpu_custom_call.1}
  #allocation0 [shape = 'u32[]', space=smem, size = 0x4, offset = 0x4, fixed_abs, tag = 'smem constant byte address 0x4 - core index']
  #allocation1 [shape = 'u32[72,128]{1,0:T(1,128)}', space=vmem, size = 0x9000, scoped, tag = 'internal scratch']
  %s0 = inlined_call_operand.hbm [shape: f32[2,32,256], index: 0, kind: input, shape index: {}]
  %s1 = inlined_call_operand.vmem [shape: f32[32,2], index: 1, kind: input, shape index: {}]
  %s2 = inlined_call_operand.vmem [shape: f32[1,2], index: 2, kind: input, shape index: {}]
  %s3 = inlined_call_operand.vmem [shape: f32[2,32], index: 3, kind: input, shape index: {}]
  %s4 = inlined_call_operand.vmem [shape: f32[1,32], index: 4, kind: input, shape index: {}]
  %s5 = inlined_call_operand.hbm [shape: f32[2,32,256], index: 5, kind: output, shape index: {}]
  %s6 = sld [smem:[#allocation0]]
  $region34: #{tpu_custom_call.1} parent=0
    _
  %s8 = ssub.s32 1, %s6
  %s9 = scalar_select 0, %s8, %s6
  $region1: #{tpu_custom_call.1} parent=0
    #allocation2 [shape = 'u8[65536]{0}', space=vmem, size = 0x10000, scoped, tag = 'input window, operand 0, single buffered']
    #allocation3 [shape = 's32[1]{0}', space=sflag, size = 0x4, scoped, tag = 'scoped memory for tpu_custom_call.1']
    #allocation4 [shape = 's32[1]{0}', space=sflag, size = 0x4, scoped, tag = 'scoped memory for tpu_custom_call.1']
    #allocation5 [shape = 'u8[65536]{0}', space=vmem, size = 0x10000, scoped, tag = 'output window, operand 0, single buffered']
    %10 = vsyncpa [#allocation3], 0
    %11 = vsyncpa [#allocation4], 0
    // Predicated region
    $region2: #{tpu_custom_call.1} parent=1 // pred_check
      _
    $region3: #{tpu_custom_call.1} parent=1 // pred_check_branch
      %13 = sbr.rel (0) target = $region5
    $region4: #{tpu_custom_call.1} parent=1 // pred_region
      %15 = vsyncadd [#allocation3], 0
      %s16 = sshll.u32 %s0, 4
      %s17 = int_to_ptr.hbm [resolvable:$true] %s16
      %s18 = sshll.u32 [#allocation2], 4
      %s19 = int_to_ptr.vmem [resolvable:$true] %s18
      %24 = dma.hbm_to_vmem [thread:$0]  %s17, 2048, %s19, [#allocation3], 256, 256, 16
    $region5: #{tpu_custom_call.1} parent=1 // pred_fallthru
      _
    // Predicated region
    $region6: #{tpu_custom_call.1} parent=1 // pred_check
      _
    $region7: #{tpu_custom_call.1} parent=1 // pred_check_branch
      %26 = sbr.rel (0) target = $region9
    $region8: #{tpu_custom_call.1} parent=1 // pred_region
      _
    $region9: #{tpu_custom_call.1} parent=1 // pred_fallthru
      _
    // Predicated region
    $region10: #{tpu_custom_call.1} parent=1 // pred_check
      _
    $region11: #{tpu_custom_call.1} parent=1 // pred_check_branch
      %28 = sbr.rel (0) target = $region13
    $region12: #{tpu_custom_call.1} parent=1 // pred_region
      _
    $region13: #{tpu_custom_call.1} parent=1 // pred_fallthru
      _
    // Predicated region
    $region14: #{tpu_custom_call.1} parent=1 // pred_check
      _
    $region15: #{tpu_custom_call.1} parent=1 // pred_check_branch
      %30 = sbr.rel (0) target = $region17
    $region16: #{tpu_custom_call.1} parent=1 // pred_region
      _
    $region17: #{tpu_custom_call.1} parent=1 // pred_fallthru
      _
    // Predicated region
    $region18: #{tpu_custom_call.1} parent=1 // pred_check
      _
    $region19: #{tpu_custom_call.1} parent=1 // pred_check_branch
      %32 = sbr.rel (0) target = $region21
    $region20: #{tpu_custom_call.1} parent=1 // pred_region
      _
    $region21: #{tpu_custom_call.1} parent=1 // pred_fallthru
      _
    // Predicated region
    $region22: #{tpu_custom_call.1} parent=1 // pred_check
      _
    $region23: #{tpu_custom_call.1} parent=1 // pred_check_branch
      %34 = sbr.rel (0) target = $region25
    $region24: #{tpu_custom_call.1} parent=1 // pred_region
      %36 = dma.done [#allocation3], 2048
    $region25: #{tpu_custom_call.1} parent=1 // pred_fallthru
      _
    %v37 = vld [vmem:[#allocation2] sm:$0xff]
    %v38 = vld [vmem:[#allocation2 + $0x8] sm:$0xff]
    %v39 = vld [vmem:[#allocation2 + $0x10] sm:$0xff]
    %v40 = vld [vmem:[#allocation2 + $0x18] sm:$0xff]
    %v41 = vld [vmem:[#allocation2 + $0x20] sm:$0xff]
    %v42 = vld [vmem:[#allocation2 + $0x28] sm:$0xff]
    %v43 = vld [vmem:[#allocation2 + $0x30] sm:$0xff]
    %v44 = vld [vmem:[#allocation2 + $0x38] sm:$0xff]
    %v45 = vld [vmem:[#allocation2 + $0x40] sm:$0xff]
    %v46 = vld [vmem:[#allocation2 + $0x48] sm:$0xff]
    %v47 = vld [vmem:[#allocation2 + $0x50] sm:$0xff]
    %v48 = vld [vmem:[#allocation2 + $0x58] sm:$0xff]
    %v49 = vld [vmem:[#allocation2 + $0x60] sm:$0xff]
    %v50 = vld [vmem:[#allocation2 + $0x68] sm:$0xff]
    %v51 = vld [vmem:[#allocation2 + $0x70] sm:$0xff]
    %v52 = vld [vmem:[#allocation2 + $0x78] sm:$0xff]
    %v53 = vadd.f32 %v37, %v38
    %54 = vadd.xlane.f32.xlu0 %v53
    %v55 = vpop.xlane.xlu0 %54
    %v56 = vadd.f32 %v39, %v40
    %57 = vadd.xlane.f32.xlu0 %v56
    %v58 = vpop.xlane.xlu0 %57
    %v59 = vadd.f32 %v41, %v42
    %60 = vadd.xlane.f32.xlu0 %v59
    %v61 = vpop.xlane.xlu0 %60
    %v62 = vadd.f32 %v43, %v44
    %63 = vadd.xlane.f32.xlu0 %v62
    %v64 = vpop.xlane.xlu0 %63
    %v65 = vadd.f32 %v45, %v46
    %66 = vadd.xlane.f32.xlu0 %v65
    %v67 = vpop.xlane.xlu0 %66
    %v68 = vadd.f32 %v47, %v48
    %69 = vadd.xlane.f32.xlu0 %v68
    %v70 = vpop.xlane.xlu0 %69
    %v71 = vadd.f32 %v49, %v50
    %72 = vadd.xlane.f32.xlu0 %v71
    %v73 = vpop.xlane.xlu0 %72
    %v74 = vadd.f32 %v51, %v52
    %75 = vadd.xlane.f32.xlu0 %v74
    %v76 = vpop.xlane.xlu0 %75
    %v77 = vrcp.pop 256.0
    %v78 = vmul.f32 256.0, %v77
    %v79 = vsub.f32 1.0, %v78
    %v80 = vmul.f32 %v77, %v79
    %v81 = vadd.f32 %v77, %v80
    %vm82 = vweird.f32 %v77
    %v83 = vsel %vm82, %v77, %v81
    %v84 = vmul.f32 %v55, %v83
    %v85 = vmul.f32 %v58, %v83
    %v86 = vmul.f32 %v61, %v83
    %v87 = vmul.f32 %v64, %v83
    %v88 = vmul.f32 %v67, %v83
    %v89 = vmul.f32 %v70, %v83
    %v90 = vmul.f32 %v73, %v83
    %v91 = vmul.f32 %v76, %v83
    %v92 = vmax.f32 %v37, %v38
    %93 = vmax.xlane.f32.xlu0 %v92
    %v94 = vpop.xlane.xlu0 %93
    %v95 = vmax.f32 %v39, %v40
    %96 = vmax.xlane.f32.xlu0 %v95
    %v97 = vpop.xlane.xlu0 %96
    %v98 = vmax.f32 %v41, %v42
    %99 = vmax.xlane.f32.xlu0 %v98
    %v100 = vpop.xlane.xlu0 %99
    %v101 = vmax.f32 %v43, %v44
    %102 = vmax.xlane.f32.xlu0 %v101
    %v103 = vpop.xlane.xlu0 %102
    %v104 = vmax.f32 %v45, %v46
    %105 = vmax.xlane.f32.xlu0 %v104
    %v106 = vpop.xlane.xlu0 %105
    %v107 = vmax.f32 %v47, %v48
    %108 = vmax.xlane.f32.xlu0 %v107
    %v109 = vpop.xlane.xlu0 %108
    %v110 = vmax.f32 %v49, %v50
    %111 = vmax.xlane.f32.xlu0 %v110
    %v112 = vpop.xlane.xlu0 %111
    %v113 = vmax.f32 %v51, %v52
    %114 = vmax.xlane.f32.xlu0 %v113
    %v115 = vpop.xlane.xlu0 %114
    %v124 = vlaneseq
    %v125 = vand.u32 %v124, 127
    %v126 = vperm.slane %v84, %v125
    %v127 = vadd.s32 %v125, 4294967288
    %v128 = vperm.slane %v85, %v127
    %vm129 = vcmask 130112
    %v130 = vsel %vm129, %v128, %v126
    %v131 = vadd.s32 %v125, 4294967280
    %v132 = vperm.slane %v86, %v131
    %vm133 = vcmask 195712
    %v134 = vsel %vm133, %v132, %v130
    %v135 = vadd.s32 %v125, 4294967272
    %v136 = vperm.slane %v87, %v135
    %vm137 = vcmask 261312
    %v138 = vsel %vm137, %v136, %v134
    %v139 = vperm.slane %v88, %v125
    %v140 = vperm.slane %v89, %v127
    %v141 = vsel %vm129, %v140, %v139
    %v142 = vperm.slane %v90, %v131
    %v143 = vsel %vm133, %v142, %v141
    %v144 = vperm.slane %v91, %v135
    %v145 = vsel %vm137, %v144, %v143
    %vm146 = vcmask 1041409
    %v147 = vsel %vm146, %v145, %v138
    %v157 = vperm.slane %v94, %v125
    %v158 = vperm.slane %v97, %v127
    %v159 = vsel %vm129, %v158, %v157
    %v160 = vperm.slane %v100, %v131
    %v161 = vsel %vm133, %v160, %v159
    %v162 = vperm.slane %v103, %v135
    %v163 = vsel %vm137, %v162, %v161
    %v164 = vperm.slane %v106, %v125
    %v165 = vperm.slane %v109, %v127
    %v166 = vsel %vm129, %v165, %v164
    %v167 = vperm.slane %v112, %v131
    %v168 = vsel %vm133, %v167, %v166
    %v169 = vperm.slane %v115, %v135
    %v170 = vsel %vm137, %v169, %v168
    %vm171 = vcmask 1043459
    %v172 = vsel %vm171, %v170, %v163
    %vm174 = vcmask 1041408
    %v175 = vsel %vm174, %v147, %v172
    %v176 = vld [vmem:[%s1] sm:$0xff]
    %v177 = vld [vmem:[%s1 + $0x8] sm:$0xff]
    %v178 = vld [vmem:[%s1 + $0x10] sm:$0xff]
    %v179 = vld [vmem:[%s1 + $0x18] sm:$0xff]
    %v180 = vld [vmem:[%s2] sm:$0x1]
    %v182 = vperm.slane %v180, 0
    %vm184 = vcmask 261120
    %v186 = vsel %vm184, %v175, 0
    %188 = vmatpush.msra.mxu0 0.0
    %189 = vmatpush.msra.mxu0 0.0
    %190 = vmatpush.msra.mxu0 0.0
    %191 = vmatpush.msra.mxu0 0.0
    %192 = vmatpush.msra.mxu0 0.0
    %193 = vmatpush.msra.mxu0 0.0
    %194 = vmatpush.msra.mxu0 0.0
    %195 = vmatpush.msra.mxu0 0.0
    %196 = vmatpush.msra.mxu0 0.0
    %197 = vmatpush.msra.mxu0 0.0
    %198 = vmatpush.msra.mxu0 0.0
    %199 = vmatpush.msra.mxu0 0.0
    %200 = vmatpush.msra.mxu0 %v179
    %201 = vmatpush.msra.mxu0 %v178
    %202 = vmatpush.msra.mxu0 %v177
    %203 = vmatpush.msra.mxu0 %v176
    %204 = vmatmul.f32.gmra.mxu0 %v186
    %v205 = vpop.f32.mrf.mxu0
    %v206 = vadd.f32 %v182, %v205
    %207 = vdwg.mxu0
    %v208 = vmax.f32 %v206, 0.0
    %v209 = vld [vmem:[%s3] sm:$0x3]
    %v210 = vld [vmem:[%s4] sm:$0x1]
    %v212 = vperm.slane %v210, 0
    %vm214 = vcmask 15360
    %v216 = vsel %vm214, %v208, 0
    %v219 = vsel %vm174, %v209, 0
    %221 = vmatpush.msra.mxu0 0.0
    %222 = vmatpush.msra.mxu0 0.0
    %223 = vmatpush.msra.mxu0 0.0
    %224 = vmatpush.msra.mxu0 0.0
    %225 = vmatpush.msra.mxu0 0.0
    %226 = vmatpush.msra.mxu0 0.0
    %227 = vmatpush.msra.mxu0 0.0
    %228 = vmatpush.msra.mxu0 0.0
    %229 = vmatpush.msra.mxu0 0.0
    %230 = vmatpush.msra.mxu0 0.0
    %231 = vmatpush.msra.mxu0 0.0
    %232 = vmatpush.msra.mxu0 0.0
    %233 = vmatpush.msra.mxu0 0.0
    %234 = vmatpush.msra.mxu0 0.0
    %235 = vmatpush.msra.mxu0 0.0
    %236 = vmatpush.msra.mxu0 %v219
    %237 = vmatmul.f32.gmra.mxu0 %v216
    %v238 = vpop.f32.mrf.mxu0
    %v239 = vadd.f32 %v212, %v238
    %240 = vdwg.mxu0
    %v242 = vrot.slane %v239, 2
    %v244 = vadd.f32 %v239, %v242
    %v245 = vxor.u32 %v244, 2147483648
    %v246 = vmul.f32 %v245, 1.442695
    %v247 = vpow.pop %v246
    %v248 = vadd.f32 %v247, 1.0
    %v249 = vrcp.pop %v248
    %v250 = vmul.f32 %v248, %v249
    %v251 = vsub.f32 1.0, %v250
    %v252 = vmul.f32 %v249, %v251
    %v253 = vadd.f32 %v249, %v252
    %vm254 = vweird.f32 %v248
    %vm255 = vweird.f32 %v249
    %vm256 = vmor %vm254, %vm255
    %v257 = vsel %vm256, %v249, %v253
    %v258 = vand.u32 2147483647, %v248
    %vm259 = vcmp.eq.f32.partialorder %v258, 8.507059e+37
    %v260 = vand.u32 %v248, 2147483648
    %v261 = vor.u32 1.1754944e-38, %v260
    %v262 = vsel %vm259, %v261, %v257
    %v263 = vmul.f32 1.0, %v262
    %v264 = vperm.slane %v263, 0
    %v265 = vlaneseq
    %v266 = vshrl.u32 %v265, 7
    %268 = vset.pattern.permute.xlu0 %v266
    %269 = vperm.xlu0 %268, %v264
    %v270 = vpop.permute.xlu0 %269
    %v271 = vlaneseq
    %v272 = vshrl.u32 %v271, 7
    %v273 = vadd.s32 %v272, 8
    %274 = vset.pattern.permute.xlu0 %v273
    %275 = vperm.xlu0 %274, %v264
    %v276 = vpop.permute.xlu0 %275
    %v277 = vlaneseq
    %v278 = vshrl.u32 %v277, 7
    %v279 = vadd.s32 %v278, 16
    %280 = vset.pattern.permute.xlu0 %v279
    %281 = vperm.xlu0 %280, %v264
    %v282 = vpop.permute.xlu0 %281
    %v283 = vlaneseq
    %v284 = vshrl.u32 %v283, 7
    %v285 = vadd.s32 %v284, 24
    %286 = vset.pattern.permute.xlu0 %v285
    %287 = vperm.xlu0 %286, %v264
    %v288 = vpop.permute.xlu0 %287
    %v289 = vperm.slane %v263, 1
    %v290 = vlaneseq
    %v291 = vshrl.u32 %v290, 7
    %293 = vset.pattern.permute.xlu0 %v291
    %294 = vperm.xlu0 %293, %v289
    %v295 = vpop.permute.xlu0 %294
    %v296 = vlaneseq
    %v297 = vshrl.u32 %v296, 7
    %v298 = vadd.s32 %v297, 8
    %299 = vset.pattern.permute.xlu0 %v298
    %300 = vperm.xlu0 %299, %v289
    %v301 = vpop.permute.xlu0 %300
    %v302 = vlaneseq
    %v303 = vshrl.u32 %v302, 7
    %v304 = vadd.s32 %v303, 16
    %305 = vset.pattern.permute.xlu0 %v304
    %306 = vperm.xlu0 %305, %v289
    %v307 = vpop.permute.xlu0 %306
    %v308 = vlaneseq
    %v309 = vshrl.u32 %v308, 7
    %v310 = vadd.s32 %v309, 24
    %311 = vset.pattern.permute.xlu0 %v310
    %312 = vperm.xlu0 %311, %v289
    %v313 = vpop.permute.xlu0 %312
    %v314 = vmul.f32 %v37, %v270
    %v315 = vmul.f32 %v38, %v270
    %v316 = vmul.f32 %v39, %v276
    %v317 = vmul.f32 %v40, %v276
    %v318 = vmul.f32 %v41, %v282
    %v319 = vmul.f32 %v42, %v282
    %v320 = vmul.f32 %v43, %v288
    %v321 = vmul.f32 %v44, %v288
    %v322 = vmul.f32 %v45, %v295
    %v323 = vmul.f32 %v46, %v295
    %v324 = vmul.f32 %v47, %v301
    %v325 = vmul.f32 %v48, %v301
    %v326 = vmul.f32 %v49, %v307
    %v327 = vmul.f32 %v50, %v307
    %v328 = vmul.f32 %v51, %v313
    %v329 = vmul.f32 %v52, %v313
    %330 = vst [vmem:[#allocation5] sm:$0xff] %v314
    %331 = vst [vmem:[#allocation5 + $0x8] sm:$0xff] %v315
    %332 = vst [vmem:[#allocation5 + $0x10] sm:$0xff] %v316
    %333 = vst [vmem:[#allocation5 + $0x18] sm:$0xff] %v317
    %334 = vst [vmem:[#allocation5 + $0x20] sm:$0xff] %v318
    %335 = vst [vmem:[#allocation5 + $0x28] sm:$0xff] %v319
    %336 = vst [vmem:[#allocation5 + $0x30] sm:$0xff] %v320
    %337 = vst [vmem:[#allocation5 + $0x38] sm:$0xff] %v321
    %338 = vst [vmem:[#allocation5 + $0x40] sm:$0xff] %v322
    %339 = vst [vmem:[#allocation5 + $0x48] sm:$0xff] %v323
    %340 = vst [vmem:[#allocation5 + $0x50] sm:$0xff] %v324
    %341 = vst [vmem:[#allocation5 + $0x58] sm:$0xff] %v325
    %342 = vst [vmem:[#allocation5 + $0x60] sm:$0xff] %v326
    %343 = vst [vmem:[#allocation5 + $0x68] sm:$0xff] %v327
    %344 = vst [vmem:[#allocation5 + $0x70] sm:$0xff] %v328
    %345 = vst [vmem:[#allocation5 + $0x78] sm:$0xff] %v329
    // Predicated region
    $region26: #{tpu_custom_call.1} parent=1 // pred_check
      _
    $region27: #{tpu_custom_call.1} parent=1 // pred_check_branch
      %347 = sbr.rel (0) target = $region29
    $region28: #{tpu_custom_call.1} parent=1 // pred_region
      %349 = vsyncadd [#allocation4], 0
      %s350 = sshll.u32 [#allocation5], 4
      %s351 = int_to_ptr.vmem [resolvable:$true] %s350
      %s352 = sshll.u32 %s5, 4
      %s353 = int_to_ptr.hbm [resolvable:$true] %s352
      %358 = dma.vmem_to_hbm [thread:$0]  %s351, 2048, %s353, [#allocation4], 256, 256, 16
    $region29: #{tpu_custom_call.1} parent=1 // pred_fallthru
      _
    // Predicated region
    $region30: #{tpu_custom_call.1} parent=1 // pred_check
      _
    $region31: #{tpu_custom_call.1} parent=1 // pred_check_branch
      %360 = sbr.rel (0) target = $region33
    $region32: #{tpu_custom_call.1} parent=1 // pred_region
      %362 = dma.done [#allocation4], 2048
    $region33: #{tpu_custom_call.1} parent=1 // pred_fallthru
      _
    %363 = vsyncpa [#allocation3], 1
    %364 = vsyncpa [#allocation4], 1

</llo_original>
